<compile_context>
chip_gen: v7x
topology: tpu7x:2x2x1
jax: 0.10.0
libtpu: 0.0.40
codegen_flags: <defaults>
</compile_context>

<pallas_src>
import functools

import numpy as np
import jax
import jax.numpy as jnp
from jax.experimental import pallas as pl
from jax.experimental.pallas import tpu as pltpu

PAD = 128   # lane-dense padding for conv-channel / class dims and the one-hot
SLOT = 32   # lanes reserved per sequence position in the packed one-hot

# ---------------- config (mirrors the PyTorch script) ----------------
sentences = ['i love you', 'he loves me', 'she likes baseball',
             'i hate you', 'sorry for that', 'this is awful']
labels = [1, 1, 1, 0, 0, 0]
word_list = ' '.join(sentences).split()
vocab = sorted(set(word_list))            # sorted -> deterministic ordering
word2idx = {w: i for i, w in enumerate(vocab)}
vocab_size = len(vocab)                   # 16
embedding_size = 2
num_classes = len(set(labels))            # 2
seq_len = 3                               # every sentence has 3 words
output_channel = 3
kernel_h = 2                              # Conv2d kernel = (2, embedding_size)


def _round_up(x, m):
    return (x + m - 1) // m * m


# ------------------------------ kernel --------------------------------
def make_textcnn_kernel(S, out_h):
    # MaxPool2d((2,1)) with one full window + Linear(OC, NC) on the flatten
    # requires pooled height == 1 (matches PyTorch floor pooling for out_h=2,3)
    assert out_h // 2 == 1, "fc Linear(OC, NC) requires pooled height == 1"

    def kernel(tok_ref, w_ref, fw_ref, out_ref):
        # tok_ref: [TM, S]          int32 token ids (batch tile)
        # w_ref  : [PAD, out_h*PAD] bf16 fused (onehot -> embedding o conv),
        #                           row PAD-1 carries conv bias + a 1.0 lane
        # fw_ref : [PAD, PAD]       bf16 fc weight^T, row PAD-1 carries fc bias
        # out_ref: [TM, PAD]        f32 lane-dense logits (real cols [:NC])
        toks = tok_ref[...]                                     # [TM, S]
        tm = toks.shape[0]

        # Packed one-hot: token of position s lights lane s*SLOT + id;
        # lane PAD-1 is always 1 (bias lane).  Built directly in bf16.
        lane = jax.lax.broadcasted_iota(jnp.int32, (tm, PAD), 1)
        oh = lane == (PAD - 1)                                  # bias lane
        for s in range(S):
            oh = jnp.logical_or(oh, lane == toks[:, s:s + 1] + s * SLOT)
        oh = oh.astype(jnp.bfloat16)                            # [TM, PAD]

        # Embedding gather + conv over both heights + conv bias: one bf16 dot.
        conv = jnp.dot(oh, w_ref[...],
                       preferred_element_type=jnp.float32)      # [TM, out_h*PAD]
        conv = jnp.maximum(conv, 0.0)                           # ReLU

        # MaxPool2d((2,1)): single window over conv heights {0, 1};
        # the two height blocks are aligned 128-lane slices.  The bias lane
        # (value 1.0 in both blocks) survives relu/max and feeds the fc bias.
        pooled = jnp.maximum(conv[:, 0:PAD], conv[:, PAD:2 * PAD])  # [TM, PAD]

        # fc: Linear(OC, NC) with folded bias; lane-dense padded output store.
        out_ref[...] = jnp.dot(pooled.astype(jnp.bfloat16), fw_ref[...],
                               preferred_element_type=jnp.float32)

    return kernel


# --------------------- one-time parameter layout prep -------------------
def prepare_params(emb_table, conv_w, conv_b, fc_w, fc_b, S):
    """Build lane-dense fused bf16 weights once (outside the jitted path).

    w_fused rows s*SLOT+v (columns of height block h) hold
    emb[v] @ conv_w[:, :, s-h, :], so that packed_onehot(tokens) @ w_fused
    equals the conv output (pre-relu) for every height h.  Row PAD-1 (the
    always-1 bias lane) holds the conv bias and a 1.0 that propagates through
    relu/maxpool so the fc bias can be folded into fw_pad's row PAD-1.
    """
    V, E = emb_table.shape
    OC, _, KH, KW = conv_w.shape
    assert KW == E
    NC = fc_w.shape[0]
    out_h = S - KH + 1
    assert V <= SLOT, "token ids must fit a 32-lane slot (grow SLOT if not)"
    assert S * SLOT <= PAD - 1, "packed one-hot + bias lane must fit 128 lanes"
    assert OC < PAD - 1 and NC <= PAD

    emb = np.asarray(emb_table, np.float32)                     # [V, E]
    cw = np.asarray(conv_w, np.float32).reshape(OC, KH * E).T   # [KH*E, OC]

    w_fused = np.zeros((PAD, out_h * PAD), np.float32)
    for h in range(out_h):
        for k in range(KH):
            s = h + k
            w_fused[s * SLOT:s * SLOT + V, h * PAD:h * PAD + OC] = (
                emb @ cw[k * E:(k + 1) * E, :])
        # conv bias folded via the always-1 lane of the packed one-hot
        w_fused[PAD - 1, h * PAD:h * PAD + OC] = np.asarray(conv_b, np.float32)
        # keep a 1.0 alive through relu/maxpool for the fc-bias fold
        w_fused[PAD - 1, h * PAD + PAD - 1] = 1.0

    fw_pad = np.zeros((PAD, PAD), np.float32)
    fw_pad[:OC, :NC] = np.asarray(fc_w, np.float32).T
    fw_pad[PAD - 1, :NC] = np.asarray(fc_b, np.float32)         # fc bias fold

    return (jnp.asarray(w_fused, jnp.bfloat16),
            jnp.asarray(fw_pad, jnp.bfloat16))


# ------------------------------ wrapper --------------------------------
@functools.partial(jax.jit, static_argnames=("tm",))
def textcnn_forward_padded(tokens, w_fused, fw_pad, *, tm=1024):
    """tokens: int32 [B, S]; fused/padded bf16 params from prepare_params.

    Returns the lane-dense padded logits slab [B_pad, 128]; real logits live
    at [:B, :num_classes].  Slice once at the end of the program (off the hot
    path) or consume the padded slab directly downstream.
    """
    B, S = tokens.shape
    out_h = w_fused.shape[1] // PAD

    # Batch tiling: sublane-aligned tile on a "parallel" grid axis.
    tm_eff = min(tm, _round_up(B, 8))
    # v7x has 2 TensorCores: guarantee >= 2 grid steps when the batch is big
    # enough to split (measured no-op on single-TC v5e/v6e).
    if B > 8 and _round_up(B, tm_eff) // tm_eff < 2:
        tm_eff = _round_up((B + 1) // 2, 8)
    B_pad = _round_up(B, tm_eff)
    tokens_p = jnp.pad(tokens.astype(jnp.int32), ((0, B_pad - B), (0, 0)))

    kernel = make_textcnn_kernel(S, out_h)
    out = pl.pallas_call(
        kernel,
        out_shape=jax.ShapeDtypeStruct((B_pad, PAD), jnp.float32),
        grid=(B_pad // tm_eff,),
        in_specs=[
            pl.BlockSpec((tm_eff, S), lambda i: (i, 0)),            # tokens
            pl.BlockSpec((PAD, out_h * PAD), lambda i: (0, 0)),     # W_fused
            pl.BlockSpec((PAD, PAD), lambda i: (0, 0)),             # fc weight
        ],
        out_specs=pl.BlockSpec((tm_eff, PAD), lambda i: (i, 0)),
        compiler_params=pltpu.CompilerParams(
            dimension_semantics=("parallel",)),
    )(tokens_p, w_fused, fw_pad)

    return out


# ----------------------------- reference --------------------------------
def reference_forward(tokens, emb_table, conv_w, conv_b, fc_w, fc_b):
    """Independent pure-JAX reference mirroring the PyTorch forward."""
    emb = emb_table[tokens][:, None].astype(jnp.float32)        # [B,1,S,E] NCHW
    conv = jax.lax.conv_general_dilated(
        emb, conv_w.astype(jnp.float32), (1, 1), 'VALID',
        dimension_numbers=('NCHW', 'OIHW', 'NCHW'))
    conv = conv + conv_b[None, :, None, None]                   # [B,OC,out_h,1]
    conv = jnp.maximum(conv, 0.0)
    pooled = jnp.maximum(conv[:, :, 0, 0], conv[:, :, 1, 0])    # pool (2,1)
    return pooled @ fc_w.T + fc_b[None, :]


if __name__ == "__main__":
    # token indices for all 6 sentences: [6, 3]
    tokens = jnp.asarray(
        [[word2idx[w] for w in s.split()] for s in sentences], dtype=jnp.int32)
    assert int(tokens.max()) < SLOT  # packed one-hot requires ids < SLOT

    # deterministic parameter init (synthetic weights, no checkpoint)
    key = jax.random.PRNGKey(0)
    k_emb, k_cw, k_cb, k_fw, k_fb = jax.random.split(key, 5)
    emb_table = jax.random.normal(k_emb, (vocab_size, embedding_size),
                                  dtype=jnp.float32)
    conv_w = jax.random.normal(
        k_cw, (output_channel, 1, kernel_h, embedding_size),
        dtype=jnp.float32) * 0.5
    conv_b = jax.random.normal(k_cb, (output_channel,), dtype=jnp.float32) * 0.1
    fc_w = jax.random.normal(k_fw, (num_classes, output_channel),
                             dtype=jnp.float32) * 0.5
    fc_b = jax.random.normal(k_fb, (num_classes,), dtype=jnp.float32) * 0.1

    # one-time layout prep (kept out of the per-call jitted path)
    w_fused, fw_pad = prepare_params(
        emb_table, conv_w, conv_b, fc_w, fc_b, seq_len)

    out_pad = textcnn_forward_padded(tokens, w_fused, fw_pad)
    out_pad = jax.block_until_ready(out_pad)

    # single slice at the very end of the program (off the hot path)
    B = tokens.shape[0]
    out = out_pad[:B, :num_classes]

    ref = reference_forward(tokens, emb_table, conv_w, conv_b, fc_w, fc_b)
    assert out.shape == (B, num_classes)
    # bf16 MXU operands (fused emb@conv weights, fc weights, pooled cast)
    # round at ~2^-9 relative; the kernel is algebraically identical otherwise.
    assert jnp.allclose(out, ref, atol=5e-2, rtol=5e-2), (out, ref)

    print("KERNEL_OK")
</pallas_src>

<mosaic_0001>
module attributes {stable_mosaic.version = 11 : i64} {
  func.func @kernel(%arg0: i32, %arg1: memref<8x3xi32, #tpu.memory_space<vmem>>, %arg2: memref<128x256xbf16, #tpu.memory_space<vmem>>, %arg3: memref<128x128xbf16, #tpu.memory_space<vmem>>, %arg4: memref<8x128xf32, #tpu.memory_space<vmem>>) attributes {dimension_semantics = [#tpu.dimension_semantics<parallel>], iteration_bounds = array<i64: 1>, scalar_prefetch = 0 : i64, scratch_operands = 0 : i64, tpu.core_type = #tpu.core_type<tc>, window_params = [{transform_indices = @transform_0, window_bounds = array<i64: 8, 3>}, {pipeline_mode = #tpu.pipeline_mode<synchronous>, transform_indices = @transform_1, window_bounds = array<i64: 128, 256>}, {pipeline_mode = #tpu.pipeline_mode<synchronous>, transform_indices = @transform_2, window_bounds = array<i64: 128, 128>}, {transform_indices = @transform_3, window_bounds = array<i64: 8, 128>}]} {
    %c0 = arith.constant 0 : index
    %c0_0 = arith.constant 0 : index
    %0 = vector.load %arg1[%c0, %c0_0] : memref<8x3xi32, #tpu.memory_space<vmem>>, vector<8x3xi32>
    %1 = tpu.iota {dimensions = array<i32: 1>} : vector<8x128xi32>
    %c127_i32 = arith.constant 127 : i32
    %2 = vector.broadcast %c127_i32 : i32 to vector<8x128xi32>
    %3 = arith.cmpi eq, %1, %2 : vector<8x128xi32>
    %4 = vector.extract_strided_slice %0 {offsets = [0, 0], sizes = [8, 1], strides = [1, 1]} : vector<8x3xi32> to vector<8x1xi32>
    %c0_i32 = arith.constant 0 : i32
    %5 = vector.broadcast %c0_i32 : i32 to vector<8x1xi32>
    %6 = arith.addi %4, %5 : vector<8x1xi32>
    %7 = vector.broadcast %6 : vector<8x1xi32> to vector<8x128xi32>
    %8 = arith.cmpi eq, %1, %7 : vector<8x128xi32>
    %9 = arith.ori %3, %8 : vector<8x128xi1>
    %10 = vector.extract_strided_slice %0 {offsets = [0, 1], sizes = [8, 1], strides = [1, 1]} : vector<8x3xi32> to vector<8x1xi32>
    %c32_i32 = arith.constant 32 : i32
    %11 = vector.broadcast %c32_i32 : i32 to vector<8x1xi32>
    %12 = arith.addi %10, %11 : vector<8x1xi32>
    %13 = vector.broadcast %12 : vector<8x1xi32> to vector<8x128xi32>
    %14 = arith.cmpi eq, %1, %13 : vector<8x128xi32>
    %15 = arith.ori %9, %14 : vector<8x128xi1>
    %16 = vector.extract_strided_slice %0 {offsets = [0, 2], sizes = [8, 1], strides = [1, 1]} : vector<8x3xi32> to vector<8x1xi32>
    %c64_i32 = arith.constant 64 : i32
    %17 = vector.broadcast %c64_i32 : i32 to vector<8x1xi32>
    %18 = arith.addi %16, %17 : vector<8x1xi32>
    %19 = vector.broadcast %18 : vector<8x1xi32> to vector<8x128xi32>
    %20 = arith.cmpi eq, %1, %19 : vector<8x128xi32>
    %21 = arith.ori %15, %20 : vector<8x128xi1>
    %22 = arith.extui %21 : vector<8x128xi1> to vector<8x128xi32>
    %23 = arith.sitofp %22 : vector<8x128xi32> to vector<8x128xf32>
    %24 = arith.truncf %23 : vector<8x128xf32> to vector<8x128xbf16>
    %c0_1 = arith.constant 0 : index
    %c0_2 = arith.constant 0 : index
    %25 = vector.load %arg2[%c0_1, %c0_2] : memref<128x256xbf16, #tpu.memory_space<vmem>>, vector<128x256xbf16>
    %cst = arith.constant dense<0.000000e+00> : vector<8x256xf32>
    %26 = tpu.matmul %24, %25, %cst {dimension_numbers = #tpu.dot_dimension_numbers<[1], [0], [0], [1], [0, 0, 1, 1], [], []>} : vector<8x128xbf16>, vector<128x256xbf16>, vector<8x256xf32> -> vector<8x256xf32>
    %cst_3 = arith.constant 0.000000e+00 : f32
    %27 = vector.broadcast %cst_3 : f32 to vector<8x256xf32>
    %28 = arith.maximumf %26, %27 : vector<8x256xf32>
    %29 = vector.extract_strided_slice %28 {offsets = [0, 0], sizes = [8, 128], strides = [1, 1]} : vector<8x256xf32> to vector<8x128xf32>
    %30 = vector.extract_strided_slice %28 {offsets = [0, 128], sizes = [8, 128], strides = [1, 1]} : vector<8x256xf32> to vector<8x128xf32>
    %31 = arith.maximumf %29, %30 : vector<8x128xf32>
    %32 = arith.truncf %31 : vector<8x128xf32> to vector<8x128xbf16>
    %c0_4 = arith.constant 0 : index
    %c0_5 = arith.constant 0 : index
    %33 = vector.load %arg3[%c0_4, %c0_5] : memref<128x128xbf16, #tpu.memory_space<vmem>>, vector<128x128xbf16>
    %cst_6 = arith.constant dense<0.000000e+00> : vector<8x128xf32>
    %34 = tpu.matmul %32, %33, %cst_6 {dimension_numbers = #tpu.dot_dimension_numbers<[1], [0], [0], [1], [0, 0, 1, 1], [], []>} : vector<8x128xbf16>, vector<128x128xbf16>, vector<8x128xf32> -> vector<8x128xf32>
    %c0_7 = arith.constant 0 : index
    %c0_8 = arith.constant 0 : index
    %35 = vector.load %arg4[%c0_7, %c0_8] : memref<8x128xf32, #tpu.memory_space<vmem>>, vector<8x128xf32>
    tpu.vector_store %arg4[%c0_7, %c0_8], %34 {strides = array<i32>} : memref<8x128xf32, #tpu.memory_space<vmem>>, vector<8x128xf32>,
    return
  }
  func.func @transform_0(%arg0: i32) -> (i32, i32) {
    %c0_i32 = arith.constant 0 : i32
    %c0_i32_0 = arith.constant 0 : i32
    return %arg0, %c0_i32 : i32, i32
  }
  func.func @transform_1(%arg0: i32) -> (i32, i32) {
    %c0_i32 = arith.constant 0 : i32
    %c0_i32_0 = arith.constant 0 : i32
    %c0_i32_1 = arith.constant 0 : i32
    return %c0_i32, %c0_i32_0 : i32, i32
  }
  func.func @transform_2(%arg0: i32) -> (i32, i32) {
    %c0_i32 = arith.constant 0 : i32
    %c0_i32_0 = arith.constant 0 : i32
    %c0_i32_1 = arith.constant 0 : i32
    return %c0_i32, %c0_i32_0 : i32, i32
  }
  func.func @transform_3(%arg0: i32) -> (i32, i32) {
    %c0_i32 = arith.constant 0 : i32
    %c0_i32_0 = arith.constant 0 : i32
    return %arg0, %c0_i32 : i32, i32
  }
}

</mosaic_0001>

<llo_original>
// kernel: textcnn_forward_padded.1
$region0: #{textcnn_forward_padded.1}
  #allocation0 [shape = 'u32[]', space=smem, size = 0x4, offset = 0x4, fixed_abs, tag = 'smem constant byte address 0x4 - core index']
  #allocation1 [shape = 'u32[144,128]{1,0:T(1,128)}', space=vmem, size = 0x12000, scoped, tag = 'internal scratch']
  %s0 = inlined_call_operand.vmem [shape: s32[8,3], index: 0, kind: input, shape index: {}]
  %s1 = inlined_call_operand.hbm [shape: bf16[128,256], index: 1, kind: input, shape index: {}]
  %s2 = inlined_call_operand.hbm [shape: bf16[128,128], index: 2, kind: input, shape index: {}]
  %s3 = inlined_call_operand.hbm [shape: f32[8,128], index: 3, kind: output, shape index: {}]
  %s4 = sld [smem:[#allocation0]]
  $region30: #{textcnn_forward_padded.1} parent=0
    _
  %s6 = ssub.s32 1, %s4
  %s7 = scalar_select 0, %s6, %s4
  $region1: #{textcnn_forward_padded.1} parent=0
    #allocation2 [shape = 'u8[65536]{0}', space=vmem, size = 0x10000, scoped, tag = 'input window, operand 1, single buffered']
    #allocation3 [shape = 's32[1]{0}', space=sflag, size = 0x4, scoped, tag = 'scoped memory for textcnn_forward_padded.1']
    #allocation4 [shape = 's32[1]{0}', space=sflag, size = 0x4, scoped, tag = 'scoped memory for textcnn_forward_padded.1']
    #allocation5 [shape = 'u8[32768]{0}', space=vmem, size = 0x8000, scoped, tag = 'input window, operand 2, single buffered']
    #allocation6 [shape = 's32[1]{0}', space=sflag, size = 0x4, scoped, tag = 'scoped memory for textcnn_forward_padded.1']
    #allocation7 [shape = 'u8[4096]{0}', space=vmem, size = 0x1000, scoped, tag = 'output window, operand 0, single buffered']
    %8 = vsyncpa [#allocation3], 0
    %9 = vsyncpa [#allocation6], 0
    %10 = vsyncpa [#allocation4], 0
    // Predicated region
    $region2: #{textcnn_forward_padded.1} parent=1 // pred_check
      _
    $region3: #{textcnn_forward_padded.1} parent=1 // pred_check_branch
      %12 = sbr.rel (0) target = $region5
    $region4: #{textcnn_forward_padded.1} parent=1 // pred_region
      _
    $region5: #{textcnn_forward_padded.1} parent=1 // pred_fallthru
      _
    // Predicated region
    $region6: #{textcnn_forward_padded.1} parent=1 // pred_check
      _
    $region7: #{textcnn_forward_padded.1} parent=1 // pred_check_branch
      %14 = sbr.rel (0) target = $region9
    $region8: #{textcnn_forward_padded.1} parent=1 // pred_region
      %s16 = ssub.s32 2048, 2048
      %17 = vsyncadd [#allocation3], %s16
      %s18 = sshll.u32 [#allocation2], 4
      %s19 = int_to_ptr.vmem [resolvable:$true] %s18
      %24 = dma.hbm_to_vmem [thread:$0]  %s1, 2048, %s19, [#allocation3], 128, 128, 8
    $region9: #{textcnn_forward_padded.1} parent=1 // pred_fallthru
      _
    // Predicated region
    $region10: #{textcnn_forward_padded.1} parent=1 // pred_check
      _
    $region11: #{textcnn_forward_padded.1} parent=1 // pred_check_branch
      %26 = sbr.rel (0) target = $region13
    $region12: #{textcnn_forward_padded.1} parent=1 // pred_region
      %s28 = ssub.s32 1024, 1024
      %29 = vsyncadd [#allocation6], %s28
      %s30 = sshll.u32 [#allocation5], 4
      %s31 = int_to_ptr.vmem [resolvable:$true] %s30
      %36 = dma.hbm_to_vmem [thread:$0]  %s2, 1024, %s31, [#allocation6], 64, 64, 4
    $region13: #{textcnn_forward_padded.1} parent=1 // pred_fallthru
      _
    // Predicated region
    $region14: #{textcnn_forward_padded.1} parent=1 // pred_check
      _
    $region15: #{textcnn_forward_padded.1} parent=1 // pred_check_branch
      %38 = sbr.rel (0) target = $region17
    $region16: #{textcnn_forward_padded.1} parent=1 // pred_region
      %39 = dma.done [#allocation3], 2048
    $region17: #{textcnn_forward_padded.1} parent=1 // pred_fallthru
      _
    // Predicated region
    $region18: #{textcnn_forward_padded.1} parent=1 // pred_check
      _
    $region19: #{textcnn_forward_padded.1} parent=1 // pred_check_branch
      %41 = sbr.rel (0) target = $region21
    $region20: #{textcnn_forward_padded.1} parent=1 // pred_region
      %42 = dma.done [#allocation6], 1024
    $region21: #{textcnn_forward_padded.1} parent=1 // pred_fallthru
      _
    %v44 = vld [vmem:[%s0] sm:$0xff]
    %v45 = vlaneseq
    %v46 = vand.u32 %v45, 127
    %vm47 = vcmp.eq.s32.totalorder %v46, 127
    %48 = vset.pattern.permute.xlu0 0
    %49 = vperm.xlu0 %48, %v44
    %v50 = vpop.permute.xlu0 %49
    %vm51 = vcmp.eq.s32.totalorder %v46, %v50
    %vm52 = vmor %vm47, %vm51
    %v53 = vadd.s32 %v44, 32
    %54 = vset.pattern.permute.xlu0 1
    %55 = vperm.xlu0 %54, %v53
    %v56 = vpop.permute.xlu0 %55
    %vm57 = vcmp.eq.s32.totalorder %v46, %v56
    %vm58 = vmor %vm52, %vm57
    %v59 = vadd.s32 %v44, 64
    %60 = vset.pattern.permute.xlu0 2
    %61 = vperm.xlu0 %60, %v59
    %v62 = vpop.permute.xlu0 %61
    %vm63 = vcmp.eq.s32.totalorder %v46, %v62
    %vm64 = vmor %vm58, %vm63
    %v65 = vsel %vm64, 1, 0
    %v66 = vcvt.s32.f32 %v65
    %v67 = vpack.c.bf16 %v66, %v66
    %v68 = vld [vmem:[#allocation2] sm:$0xff]
    %v69 = vld [vmem:[#allocation2 + $0x8] sm:$0xff]
    %v70 = vld [vmem:[#allocation2 + $0x10] sm:$0xff]
    %v71 = vld [vmem:[#allocation2 + $0x18] sm:$0xff]
    %v72 = vld [vmem:[#allocation2 + $0x20] sm:$0xff]
    %v73 = vld [vmem:[#allocation2 + $0x28] sm:$0xff]
    %v74 = vld [vmem:[#allocation2 + $0x30] sm:$0xff]
    %v75 = vld [vmem:[#allocation2 + $0x38] sm:$0xff]
    %v76 = vld [vmem:[#allocation2 + $0x40] sm:$0xff]
    %v77 = vld [vmem:[#allocation2 + $0x48] sm:$0xff]
    %v78 = vld [vmem:[#allocation2 + $0x50] sm:$0xff]
    %v79 = vld [vmem:[#allocation2 + $0x58] sm:$0xff]
    %v80 = vld [vmem:[#allocation2 + $0x60] sm:$0xff]
    %v81 = vld [vmem:[#allocation2 + $0x68] sm:$0xff]
    %v82 = vld [vmem:[#allocation2 + $0x70] sm:$0xff]
    %v83 = vld [vmem:[#allocation2 + $0x78] sm:$0xff]
    %v100 = vunpack.c.l.b16 %v68
    %v101 = vunpack.c.h.b16 %v68
    %v102 = vunpack.c.l.b16 %v69
    %v103 = vunpack.c.h.b16 %v69
    %v104 = vunpack.c.l.b16 %v70
    %v105 = vunpack.c.h.b16 %v70
    %v106 = vunpack.c.l.b16 %v71
    %v107 = vunpack.c.h.b16 %v71
    %v108 = vunpack.c.l.b16 %v72
    %v109 = vunpack.c.h.b16 %v72
    %v110 = vunpack.c.l.b16 %v73
    %v111 = vunpack.c.h.b16 %v73
    %v112 = vunpack.c.l.b16 %v74
    %v113 = vunpack.c.h.b16 %v74
    %v114 = vunpack.c.l.b16 %v75
    %v115 = vunpack.c.h.b16 %v75
    %v116 = vunpack.c.l.b16 %v76
    %v117 = vunpack.c.h.b16 %v76
    %v118 = vunpack.c.l.b16 %v77
    %v119 = vunpack.c.h.b16 %v77
    %v120 = vunpack.c.l.b16 %v78
    %v121 = vunpack.c.h.b16 %v78
    %v122 = vunpack.c.l.b16 %v79
    %v123 = vunpack.c.h.b16 %v79
    %v124 = vunpack.c.l.b16 %v80
    %v125 = vunpack.c.h.b16 %v80
    %v126 = vunpack.c.l.b16 %v81
    %v127 = vunpack.c.h.b16 %v81
    %v128 = vunpack.c.l.b16 %v82
    %v129 = vunpack.c.h.b16 %v82
    %v130 = vunpack.c.l.b16 %v83
    %v131 = vunpack.c.h.b16 %v83
    %v132 = vpack.c.b16 %v102, %v100
    %v133 = vpack.c.b16 %v103, %v101
    %v134 = vpack.c.b16 %v106, %v104
    %v135 = vpack.c.b16 %v107, %v105
    %v136 = vpack.c.b16 %v110, %v108
    %v137 = vpack.c.b16 %v111, %v109
    %v138 = vpack.c.b16 %v114, %v112
    %v139 = vpack.c.b16 %v115, %v113
    %v140 = vpack.c.b16 %v118, %v116
    %v141 = vpack.c.b16 %v119, %v117
    %v142 = vpack.c.b16 %v122, %v120
    %v143 = vpack.c.b16 %v123, %v121
    %v144 = vpack.c.b16 %v126, %v124
    %v145 = vpack.c.b16 %v127, %v125
    %v146 = vpack.c.b16 %v130, %v128
    %v147 = vpack.c.b16 %v131, %v129
    %164 = vmatprep.subr.bf16.mxu0 %v133
    %165 = vmatpush1.bf16.msra.mxu0 %v132
    %166 = vmatprep.subr.bf16.mxu0 %v135
    %167 = vmatpush1.bf16.msra.mxu0 %v134
    %168 = vmatprep.subr.bf16.mxu0 %v137
    %169 = vmatpush1.bf16.msra.mxu0 %v136
    %170 = vmatprep.subr.bf16.mxu0 %v139
    %171 = vmatpush1.bf16.msra.mxu0 %v138
    %172 = vmatprep.subr.bf16.mxu0 %v141
    %173 = vmatpush1.bf16.msra.mxu0 %v140
    %174 = vmatprep.subr.bf16.mxu0 %v143
    %175 = vmatpush1.bf16.msra.mxu0 %v142
    %176 = vmatprep.subr.bf16.mxu0 %v145
    %177 = vmatpush1.bf16.msra.mxu0 %v144
    %178 = vmatprep.subr.bf16.mxu0 %v147
    %179 = vmatpush1.bf16.msra.mxu0 %v146
    %180 = vmatprep.subr.bf16.mxu0 0
    %181 = vmatpush1.bf16.msra.mxu0 0
    %182 = vmatprep.subr.bf16.mxu0 0
    %183 = vmatpush1.bf16.msra.mxu0 0
    %184 = vmatprep.subr.bf16.mxu0 0
    %185 = vmatpush1.bf16.msra.mxu0 0
    %186 = vmatprep.subr.bf16.mxu0 0
    %187 = vmatpush1.bf16.msra.mxu0 0
    %188 = vmatprep.subr.bf16.mxu0 0
    %189 = vmatpush1.bf16.msra.mxu0 0
    %190 = vmatprep.subr.bf16.mxu0 0
    %191 = vmatpush1.bf16.msra.mxu0 0
    %192 = vmatprep.subr.bf16.mxu0 0
    %193 = vmatpush1.bf16.msra.mxu0 0
    %194 = vmatprep.subr.bf16.mxu0 0
    %195 = vmatpush1.bf16.msra.mxu0 0
    %196 = vmatprep.mubr.bf16.mxu0 0
    %197 = vmatmul.mubr.bf16.gmra.mrb[0].mxu0 %v67
    %v198 = vpop.f32.mrb[0].mxu0
    %v199 = vadd.f32 0.0, %v198
    %v200 = vpop.f32.mrb[0].mxu0
    %v201 = vadd.f32 0.0, %v200
    %v202 = vpop.f32.mrb[0].mxu0
    %v203 = vpop.f32.mrb[0].mxu0
    %204 = vdwg.mxu0
    %v205 = vmax.f32 %v199, 0.0
    %v206 = vmax.f32 %v201, 0.0
    %v207 = vmax.f32 %v205, %v206
    %v208 = vpack.c.bf16 %v207, %v207
    %v209 = vld [vmem:[#allocation5] sm:$0xf]
    %v210 = vld [vmem:[#allocation5 + $0x4] sm:$0xf]
    %v211 = vld [vmem:[#allocation5 + $0x8] sm:$0xf]
    %v212 = vld [vmem:[#allocation5 + $0xc] sm:$0xf]
    %v213 = vld [vmem:[#allocation5 + $0x10] sm:$0xf]
    %v214 = vld [vmem:[#allocation5 + $0x14] sm:$0xf]
    %v215 = vld [vmem:[#allocation5 + $0x18] sm:$0xf]
    %v216 = vld [vmem:[#allocation5 + $0x1c] sm:$0xf]
    %v217 = vld [vmem:[#allocation5 + $0x20] sm:$0xf]
    %v218 = vld [vmem:[#allocation5 + $0x24] sm:$0xf]
    %v219 = vld [vmem:[#allocation5 + $0x28] sm:$0xf]
    %v220 = vld [vmem:[#allocation5 + $0x2c] sm:$0xf]
    %v221 = vld [vmem:[#allocation5 + $0x30] sm:$0xf]
    %v222 = vld [vmem:[#allocation5 + $0x34] sm:$0xf]
    %v223 = vld [vmem:[#allocation5 + $0x38] sm:$0xf]
    %v224 = vld [vmem:[#allocation5 + $0x3c] sm:$0xf]
    %v241 = vunpack.c.l.b16 %v209
    %v242 = vunpack.c.l.b16 %v210
    %v243 = vunpack.c.l.b16 %v211
    %v244 = vunpack.c.l.b16 %v212
    %v245 = vunpack.c.l.b16 %v213
    %v246 = vunpack.c.l.b16 %v214
    %v247 = vunpack.c.l.b16 %v215
    %v248 = vunpack.c.l.b16 %v216
    %v249 = vunpack.c.l.b16 %v217
    %v250 = vunpack.c.l.b16 %v218
    %v251 = vunpack.c.l.b16 %v219
    %v252 = vunpack.c.l.b16 %v220
    %v253 = vunpack.c.l.b16 %v221
    %v254 = vunpack.c.l.b16 %v222
    %v255 = vunpack.c.l.b16 %v223
    %v256 = vunpack.c.l.b16 %v224
    %v257 = vpack.c.b16 %v242, %v241
    %v258 = vpack.c.b16 %v244, %v243
    %v259 = vpack.c.b16 %v246, %v245
    %v260 = vpack.c.b16 %v248, %v247
    %v261 = vpack.c.b16 %v250, %v249
    %v262 = vpack.c.b16 %v252, %v251
    %v263 = vpack.c.b16 %v254, %v253
    %v264 = vpack.c.b16 %v256, %v255
    %273 = vmatprep.subr.bf16.mxu0 0
    %274 = vmatpush1.bf16.msra.mxu0 %v257
    %275 = vmatprep.subr.bf16.mxu0 0
    %276 = vmatpush1.bf16.msra.mxu0 %v258
    %277 = vmatprep.subr.bf16.mxu0 0
    %278 = vmatpush1.bf16.msra.mxu0 %v259
    %279 = vmatprep.subr.bf16.mxu0 0
    %280 = vmatpush1.bf16.msra.mxu0 %v260
    %281 = vmatprep.subr.bf16.mxu0 0
    %282 = vmatpush1.bf16.msra.mxu0 %v261
    %283 = vmatprep.subr.bf16.mxu0 0
    %284 = vmatpush1.bf16.msra.mxu0 %v262
    %285 = vmatprep.subr.bf16.mxu0 0
    %286 = vmatpush1.bf16.msra.mxu0 %v263
    %287 = vmatprep.subr.bf16.mxu0 0
    %288 = vmatpush1.bf16.msra.mxu0 %v264
    %289 = vmatprep.subr.bf16.mxu0 0
    %290 = vmatpush1.bf16.msra.mxu0 0
    %291 = vmatprep.subr.bf16.mxu0 0
    %292 = vmatpush1.bf16.msra.mxu0 0
    %293 = vmatprep.subr.bf16.mxu0 0
    %294 = vmatpush1.bf16.msra.mxu0 0
    %295 = vmatprep.subr.bf16.mxu0 0
    %296 = vmatpush1.bf16.msra.mxu0 0
    %297 = vmatprep.subr.bf16.mxu0 0
    %298 = vmatpush1.bf16.msra.mxu0 0
    %299 = vmatprep.subr.bf16.mxu0 0
    %300 = vmatpush1.bf16.msra.mxu0 0
    %301 = vmatprep.subr.bf16.mxu0 0
    %302 = vmatpush1.bf16.msra.mxu0 0
    %303 = vmatprep.subr.bf16.mxu0 0
    %304 = vmatpush1.bf16.msra.mxu0 0
    %305 = vmatprep.mubr.bf16.mxu0 0
    %306 = vmatmul.mubr.bf16.gmra.mrb[0].mxu0 %v208
    %v307 = vpop.f32.mrb[0].mxu0
    %v308 = vadd.f32 0.0, %v307
    %v309 = vpop.f32.mrb[0].mxu0
    %v310 = vpop.f32.mrb[0].mxu0
    %v311 = vpop.f32.mrb[0].mxu0
    %312 = vdwg.mxu0
    %313 = vst [vmem:[#allocation7] sm:$0xff] %v308
    // Predicated region
    $region22: #{textcnn_forward_padded.1} parent=1 // pred_check
      _
    $region23: #{textcnn_forward_padded.1} parent=1 // pred_check_branch
      %315 = sbr.rel (0) target = $region25
    $region24: #{textcnn_forward_padded.1} parent=1 // pred_region
      %s317 = ssub.s32 128, 128
      %318 = vsyncadd [#allocation4], %s317
      %s320 = sshll.u32 [#allocation7], 4
      %s321 = int_to_ptr.vmem [resolvable:$true] %s320
      %323 = dma.vmem_to_hbm [thread:$0]  %s321, 128, %s3, [#allocation4]
    $region25: #{textcnn_forward_padded.1} parent=1 // pred_fallthru
      _
    // Predicated region
    $region26: #{textcnn_forward_padded.1} parent=1 // pred_check
      _
    $region27: #{textcnn_forward_padded.1} parent=1 // pred_check_branch
      %325 = sbr.rel (0) target = $region29
    $region28: #{textcnn_forward_padded.1} parent=1 // pred_region
      %326 = dma.done [#allocation4], 128
    $region29: #{textcnn_forward_padded.1} parent=1 // pred_fallthru
      _
    %327 = vsyncpa [#allocation3], 1
    %328 = vsyncpa [#allocation6], 1
    %329 = vsyncpa [#allocation4], 1

</llo_original>
